<compile_context>
chip_gen: v7x
topology: tpu7x:2x2x1
jax: 0.10.0
libtpu: 0.0.40
codegen_flags: <defaults>
</compile_context>

<pallas_src>
import numpy as np
import jax
import jax.numpy as jnp
from jax import lax
from jax.experimental import pallas as pl
from jax.experimental.pallas import tpu as pltpu

INPUT_DIM = 8
HIDDEN_DIM = 64
OUTPUT_DIM = 1
NITERS = 3
BN_EPS = 1e-5

NODE_TILE = 128                    # node rows per EdgeConv output block
VMEM_LIMIT = 48 * 1024 * 1024      # <= ~48 MiB: safe on v7x (64 MiB physical)


def _cdiv(a, b):
    return -(-a // b)


def _round_up(a, b):
    return _cdiv(a, b) * b


# ----------------------------- Pallas kernels ------------------------------

def _inputnet_kernel(x_ref, w1_ref, b1_ref, w2_ref, b2_ref, o_ref):
    """Linear (+ folded eval BN) -> Tanh -> [Dropout=id] -> Linear -> ReLU."""
    h = jnp.dot(x_ref[...].astype(jnp.bfloat16), w1_ref[...],
                preferred_element_type=jnp.float32) + b1_ref[...]
    h = jnp.tanh(h)                                    # f32 epilogue (EUP)
    h = jnp.dot(h.astype(jnp.bfloat16), w2_ref[...],
                preferred_element_type=jnp.float32) + b2_ref[...]
    o_ref[...] = jnp.maximum(h, 0.0)


def _edgeconv_kernel(tile_blk_ref, tile_first_ref,             # scalar prefetch
                     loc_row_ref, loc_col_ref, xj_ref, hblk_ref,
                     w1_ref, b1_ref, w2_ref, b2_ref,
                     o_ref):
    """EdgeConv message MLP + sorted-segment 'add' aggregation.

    One grid step = one edge tile whose targets all live in a single node
    block.  The H block and the output block are both indexed by blk[t]
    (data dependent); consecutive tiles of the same node block accumulate
    into the resident output block.  One-hot scatter/gather operands are
    built in-kernel from int32 local indices (padding edges have index -1).
    """
    t = pl.program_id(0)
    edge_tile = xj_ref.shape[0]
    node_tile = hblk_ref.shape[0]

    loc_r = loc_row_ref[0:1, :]                         # (1, E_T) int32
    loc_c = loc_col_ref[...]                            # (E_T, 1) int32
    onehot = (lax.broadcasted_iota(jnp.int32, (node_tile, edge_tile), 0)
              == loc_r).astype(jnp.bfloat16)            # scatter  [N_T, E_T]
    onehot_t = (lax.broadcasted_iota(jnp.int32, (edge_tile, node_tile), 1)
                == loc_c).astype(jnp.bfloat16)          # gather   [E_T, N_T]

    # x_i = H[target] reconstructed from the resident node block (no HBM gather)
    hblk = hblk_ref[...].astype(jnp.bfloat16)
    x_i = jnp.dot(onehot_t, hblk, preferred_element_type=jnp.float32)   # [E_T, H]
    x_j = xj_ref[...].astype(jnp.float32)
    d = x_j - x_i

    # message MLP: one K=128 matmul via in-VMEM lane concat
    cat = jnp.concatenate([x_i, d], axis=-1).astype(jnp.bfloat16)       # [E_T, 2H]
    h = jnp.dot(cat, w1_ref[...], preferred_element_type=jnp.float32) + b1_ref[...]
    h = jnp.maximum(h, 0.0)
    # Dropout(0.2): identity in eval mode
    m = jnp.dot(h.astype(jnp.bfloat16), w2_ref[...],
                preferred_element_type=jnp.float32) + b2_ref[...]
    m = jnp.maximum(m, 0.0)

    # local scatter (bf16 MXU; onehot is exact 0/1), f32 accumulation
    contrib = jnp.dot(onehot, m.astype(jnp.bfloat16),
                      preferred_element_type=jnp.float32)               # [N_T, H]

    @pl.when(tile_first_ref[t] == 1)                    # first tile of this block
    def _():
        o_ref[...] = jnp.zeros_like(o_ref)

    o_ref[...] += contrib


def _edgenet_kernel(hs_ref, hd_ref, w1_ref, b1_ref, w2r_ref, b2_ref, o_ref):
    """Linear -> ReLU -> [Dropout=id] -> Linear(64->1) -> Sigmoid."""
    cat = jnp.concatenate([hs_ref[...], hd_ref[...]], axis=-1).astype(jnp.bfloat16)
    h = jnp.dot(cat, w1_ref[...], preferred_element_type=jnp.float32) + b1_ref[...]
    h = jnp.maximum(h, 0.0)
    # final 64 -> 1 projection as a lane reduction (avoids an N=1 MXU matmul)
    z = jnp.sum(h * w2r_ref[...], axis=-1, keepdims=True) + b2_ref[...]
    o_ref[...] = jax.nn.sigmoid(z)


# --------------------------- parameters (synthetic) --------------------------

def _linear_params(key, fan_in, fan_out):
    """PyTorch nn.Linear default init: U(-1/sqrt(fan_in), 1/sqrt(fan_in))."""
    kw, kb = jax.random.split(key)
    bound = 1.0 / np.sqrt(fan_in)
    w = jax.random.uniform(kw, (fan_in, fan_out), jnp.float32, -bound, bound)
    b = jax.random.uniform(kb, (1, fan_out), jnp.float32, -bound, bound)
    return w, b


def init_params(key, input_dim=INPUT_DIM, hidden_dim=HIDDEN_DIM,
                output_dim=OUTPUT_DIM):
    keys = jax.random.split(key, 6)
    in_w1, in_b1 = _linear_params(keys[0], input_dim, hidden_dim)
    bn_gamma = jnp.ones((1, hidden_dim), jnp.float32)
    bn_beta = jnp.zeros((1, hidden_dim), jnp.float32)
    bn_mean = jnp.zeros((1, hidden_dim), jnp.float32)   # running stats (eval)
    bn_var = jnp.ones((1, hidden_dim), jnp.float32)
    in_w2, in_b2 = _linear_params(keys[1], hidden_dim, hidden_dim)
    gc_w1, gc_b1 = _linear_params(keys[2], 2 * hidden_dim, 2 * hidden_dim)
    gc_w2, gc_b2 = _linear_params(keys[3], 2 * hidden_dim, hidden_dim)
    en_w1, en_b1 = _linear_params(keys[4], 2 * hidden_dim, hidden_dim)
    en_w2, en_b2 = _linear_params(keys[5], hidden_dim, output_dim)

    # fold eval-mode BatchNorm1d into the first input-net Linear
    scale = bn_gamma * jax.lax.rsqrt(bn_var + BN_EPS)
    in_w1f = in_w1 * scale
    in_b1f = (in_b1 - bn_mean) * scale + bn_beta

    return {
        # input network (BN folded)
        "in_w1": in_w1f.astype(jnp.bfloat16), "in_b1": in_b1f,
        "in_w2": in_w2.astype(jnp.bfloat16), "in_b2": in_b2,
        # EdgeConv message MLP (full K=128 first layer)
        "gc_w1": gc_w1.astype(jnp.bfloat16), "gc_b1": gc_b1,
        "gc_w2": gc_w2.astype(jnp.bfloat16), "gc_b2": gc_b2,
        # edge network (full K=128 first layer; last layer as a row vector)
        "en_w1": en_w1.astype(jnp.bfloat16), "en_b1": en_b1,
        "en_w2r": en_w2.T,                               # (1, hidden) f32
        "en_b2": en_b2.reshape(1, output_dim),           # (1, 1) f32
    }


# ------------------------ graph preprocessing (glue) -------------------------

def prepare_conv_edges(edge_index, num_nodes):
    """add_self_loops then to_undirected (symmetrize + coalesce/dedup)."""
    src = np.asarray(edge_index[0]).astype(np.int64)
    dst = np.asarray(edge_index[1]).astype(np.int64)
    loop = np.arange(num_nodes, dtype=np.int64)
    src = np.concatenate([src, loop])
    dst = np.concatenate([dst, loop])
    u = np.concatenate([src, dst])          # source j
    v = np.concatenate([dst, src])          # target i
    keys = u * num_nodes + v
    _, idx = np.unique(keys, return_index=True)
    return u[idx].astype(np.int32), v[idx].astype(np.int32)


def build_edge_tiles(und_src, und_tgt, num_nodes, node_tile, edge_tile):
    """Sort edges by target, pad so each edge tile owns exactly one node block,
    and encode per-edge local target indices (int32, -1 = padding)."""
    num_blocks = _cdiv(num_nodes, node_tile)
    order = np.argsort(und_tgt, kind="stable")
    s = np.asarray(und_src)[order]
    t = np.asarray(und_tgt)[order]
    blk = t // node_tile

    src_chunks, loc_chunks, tile_blk = [], [], []
    for b in range(num_blocks):
        sel = blk == b
        es, et = s[sel], t[sel]
        n = int(es.shape[0])
        ntiles = max(1, _cdiv(n, edge_tile))
        pad = ntiles * edge_tile - n
        src_chunks.append(np.concatenate([es, np.zeros(pad, np.int32)]))
        loc = (et - b * node_tile).astype(np.int32)
        loc_chunks.append(np.concatenate([loc, -np.ones(pad, np.int32)]))
        tile_blk.extend([b] * ntiles)

    src_p = np.concatenate(src_chunks).astype(np.int32)      # [num_tiles*E_T]
    loc_p = np.concatenate(loc_chunks).astype(np.int32)      # [num_tiles*E_T]
    tile_blk = np.asarray(tile_blk, np.int32)
    tile_first = np.ones_like(tile_blk)
    if tile_blk.shape[0] > 1:
        tile_first[1:] = (tile_blk[1:] != tile_blk[:-1]).astype(np.int32)
    num_tiles = int(tile_blk.shape[0])

    # two layouts of the same indices (row: for the scatter one-hot, col: for
    # the gather one-hot); row layout replicated to 8 sublanes for clean tiling
    loc_row = np.repeat(loc_p.reshape(num_tiles, 1, edge_tile), 8, axis=1)
    loc_row = loc_row.reshape(num_tiles * 8, edge_tile)
    loc_col = loc_p.reshape(num_tiles * edge_tile, 1)

    return {
        "src": jnp.asarray(src_p),
        "loc_row": jnp.asarray(loc_row), "loc_col": jnp.asarray(loc_col),
        "tile_blk": jnp.asarray(tile_blk), "tile_first": jnp.asarray(tile_first),
        "num_tiles": num_tiles, "num_blocks": num_blocks, "edge_tile": edge_tile,
    }


# ------------------------------ kernel callers --------------------------------

def _inputnet_call(params, x_pad):
    np_nodes = x_pad.shape[0]
    in_tile = 256 if np_nodes % 256 == 0 else 128
    const = lambda i: (0, 0)
    return pl.pallas_call(
        _inputnet_kernel,
        out_shape=jax.ShapeDtypeStruct((np_nodes, HIDDEN_DIM), jnp.float32),
        grid=(np_nodes // in_tile,),
        in_specs=[
            pl.BlockSpec((in_tile, x_pad.shape[1]), lambda i: (i, 0)),
            pl.BlockSpec(params["in_w1"].shape, const),
            pl.BlockSpec(params["in_b1"].shape, const),
            pl.BlockSpec(params["in_w2"].shape, const),
            pl.BlockSpec(params["in_b2"].shape, const),
        ],
        out_specs=pl.BlockSpec((in_tile, HIDDEN_DIM), lambda i: (i, 0)),
        compiler_params=pltpu.CompilerParams(
            dimension_semantics=("parallel",), vmem_limit_bytes=VMEM_LIMIT),
    )(x_pad, params["in_w1"], params["in_b1"], params["in_w2"], params["in_b2"])


def _edgeconv_call(params, H, meta):
    np_nodes = meta["num_blocks"] * NODE_TILE
    edge_tile = meta["edge_tile"]
    # x_j = H[source] gather (bf16 to halve HBM traffic); x_i needs no gather.
    x_j = jnp.take(H.astype(jnp.bfloat16), meta["src"], axis=0)

    const = lambda t, blk, first: (0, 0)
    tiled = lambda t, blk, first: (t, 0)
    blk_map = lambda t, blk, first: (blk[t], 0)

    return pl.pallas_call(
        _edgeconv_kernel,
        out_shape=jax.ShapeDtypeStruct((np_nodes, HIDDEN_DIM), jnp.float32),
        grid_spec=pltpu.PrefetchScalarGridSpec(
            num_scalar_prefetch=2,
            grid=(meta["num_tiles"],),
            in_specs=[
                pl.BlockSpec((8, edge_tile), tiled),              # loc_row
                pl.BlockSpec((edge_tile, 1), tiled),              # loc_col
                pl.BlockSpec((edge_tile, HIDDEN_DIM), tiled),     # x_j (bf16)
                pl.BlockSpec((NODE_TILE, HIDDEN_DIM), blk_map),   # H node block
                pl.BlockSpec(params["gc_w1"].shape, const),
                pl.BlockSpec(params["gc_b1"].shape, const),
                pl.BlockSpec(params["gc_w2"].shape, const),
                pl.BlockSpec(params["gc_b2"].shape, const),
            ],
            out_specs=pl.BlockSpec((NODE_TILE, HIDDEN_DIM), blk_map),
        ),
        compiler_params=pltpu.CompilerParams(
            dimension_semantics=("arbitrary",), vmem_limit_bytes=VMEM_LIMIT),
    )(meta["tile_blk"], meta["tile_first"], meta["loc_row"], meta["loc_col"],
      x_j, H, params["gc_w1"], params["gc_b1"], params["gc_w2"], params["gc_b2"])


def _edgenet_call(params, hs, hd, ep, en_tile):
    const = lambda i: (0, 0)
    return pl.pallas_call(
        _edgenet_kernel,
        out_shape=jax.ShapeDtypeStruct((ep, 1), jnp.float32),
        grid=(ep // en_tile,),
        in_specs=[
            pl.BlockSpec((en_tile, HIDDEN_DIM), lambda i: (i, 0)),
            pl.BlockSpec((en_tile, HIDDEN_DIM), lambda i: (i, 0)),
            pl.BlockSpec(params["en_w1"].shape, const),
            pl.BlockSpec(params["en_b1"].shape, const),
            pl.BlockSpec(params["en_w2r"].shape, const),
            pl.BlockSpec(params["en_b2"].shape, const),
        ],
        out_specs=pl.BlockSpec((en_tile, 1), lambda i: (i, 0)),
        compiler_params=pltpu.CompilerParams(
            dimension_semantics=("parallel",), vmem_limit_bytes=VMEM_LIMIT),
    )(hs, hd, params["en_w1"], params["en_b1"], params["en_w2r"], params["en_b2"])


# ------------------------------ forward pass ---------------------------------

def graphnet_forward(params, x, edge_index, num_nodes):
    edge_index = np.asarray(edge_index)

    # graph prep: add_self_loops + to_undirected, sort by target, tile metadata
    und_src, und_tgt = prepare_conv_edges(edge_index, num_nodes)
    num_blocks = _cdiv(num_nodes, NODE_TILE)
    # EDGE_TILE ~ avg edges per node block, rounded up to the v6e/v7x MXU
    # M-multiple (256, also fine on v5e's 128), capped to bound padding waste.
    avg_per_block = _cdiv(int(und_src.shape[0]), num_blocks)
    edge_tile = int(min(1024, max(256, _round_up(avg_per_block, 256))))
    meta = build_edge_tiles(und_src, und_tgt, num_nodes, NODE_TILE, edge_tile)
    np_nodes = num_blocks * NODE_TILE

    # --- input network ---
    x_pad = jnp.zeros((np_nodes, x.shape[1]), jnp.float32).at[:num_nodes].set(x)
    H = _inputnet_call(params, x_pad)

    # --- EdgeConv iterations (shared prepared edges) ---
    for _ in range(NITERS):
        H = _edgeconv_call(params, H, meta)

    # --- edge network on the ORIGINAL directed edges ---
    E = edge_index.shape[1]
    en_tile = 512 if E >= 512 else 256
    ep = _round_up(E, en_tile)
    src = np.zeros(ep, np.int32); src[:E] = edge_index[0]
    dst = np.zeros(ep, np.int32); dst[:E] = edge_index[1]
    Hb = H.astype(jnp.bfloat16)
    hs = jnp.take(Hb, jnp.asarray(src), axis=0)
    hd = jnp.take(Hb, jnp.asarray(dst), axis=0)
    out = _edgenet_call(params, hs, hd, ep, en_tile)
    return out[:E, 0]


# ----------------------------------- main ------------------------------------

if __name__ == "__main__":
    key = jax.random.PRNGKey(0)
    k_param, k_x, k_e = jax.random.split(key, 3)

    num_nodes = 16
    num_edges = 32

    params = init_params(k_param)
    x = jax.random.normal(k_x, (num_nodes, INPUT_DIM), jnp.float32)
    edge_index = np.asarray(
        jax.random.randint(k_e, (2, num_edges), 0, num_nodes, jnp.int32))

    out = graphnet_forward(params, x, edge_index, num_nodes)
    out = jax.block_until_ready(out)

    assert out.shape == (num_edges,)
    assert bool(jnp.all(jnp.isfinite(out)))
    assert bool(jnp.all((out >= 0.0) & (out <= 1.0)))  # sigmoid output range
    print("KERNEL_OK")
</pallas_src>

<mosaic_0001>
module attributes {stable_mosaic.version = 11 : i64} {
  func.func @_inputnet_kernel(%arg0: i32, %arg1: memref<128x8xf32, #tpu.memory_space<vmem>>, %arg2: memref<8x64xbf16, #tpu.memory_space<vmem>>, %arg3: memref<1x64xf32, #tpu.memory_space<vmem>>, %arg4: memref<64x64xbf16, #tpu.memory_space<vmem>>, %arg5: memref<1x64xf32, #tpu.memory_space<vmem>>, %arg6: memref<128x64xf32, #tpu.memory_space<vmem>>) attributes {dimension_semantics = [#tpu.dimension_semantics<parallel>], iteration_bounds = array<i64: 1>, scalar_prefetch = 0 : i64, scratch_operands = 0 : i64, tpu.core_type = #tpu.core_type<tc>, window_params = [{transform_indices = @transform_0, window_bounds = array<i64: 128, 8>}, {pipeline_mode = #tpu.pipeline_mode<synchronous>, transform_indices = @transform_1, window_bounds = array<i64: 8, 64>}, {pipeline_mode = #tpu.pipeline_mode<synchronous>, transform_indices = @transform_2, window_bounds = array<i64: 1, 64>}, {pipeline_mode = #tpu.pipeline_mode<synchronous>, transform_indices = @transform_3, window_bounds = array<i64: 64, 64>}, {pipeline_mode = #tpu.pipeline_mode<synchronous>, transform_indices = @transform_4, window_bounds = array<i64: 1, 64>}, {transform_indices = @transform_5, window_bounds = array<i64: 128, 64>}]} {
    %c0 = arith.constant 0 : index
    %c0_0 = arith.constant 0 : index
    %0 = vector.load %arg1[%c0, %c0_0] : memref<128x8xf32, #tpu.memory_space<vmem>>, vector<128x8xf32>
    %1 = arith.truncf %0 : vector<128x8xf32> to vector<128x8xbf16>
    %c0_1 = arith.constant 0 : index
    %c0_2 = arith.constant 0 : index
    %2 = vector.load %arg2[%c0_1, %c0_2] : memref<8x64xbf16, #tpu.memory_space<vmem>>, vector<8x64xbf16>
    %cst = arith.constant dense<0.000000e+00> : vector<128x64xf32>
    %3 = tpu.matmul %1, %2, %cst {dimension_numbers = #tpu.dot_dimension_numbers<[1], [0], [0], [1], [0, 0, 1, 1], [], []>} : vector<128x8xbf16>, vector<8x64xbf16>, vector<128x64xf32> -> vector<128x64xf32>
    %c0_3 = arith.constant 0 : index
    %c0_4 = arith.constant 0 : index
    %4 = vector.load %arg3[%c0_3, %c0_4] : memref<1x64xf32, #tpu.memory_space<vmem>>, vector<1x64xf32>
    %5 = vector.broadcast %4 : vector<1x64xf32> to vector<128x64xf32>
    %6 = arith.addf %3, %5 : vector<128x64xf32>
    %7 = math.tanh %6 : vector<128x64xf32>
    %8 = arith.truncf %7 : vector<128x64xf32> to vector<128x64xbf16>
    %c0_5 = arith.constant 0 : index
    %c0_6 = arith.constant 0 : index
    %9 = vector.load %arg4[%c0_5, %c0_6] : memref<64x64xbf16, #tpu.memory_space<vmem>>, vector<64x64xbf16>
    %cst_7 = arith.constant dense<0.000000e+00> : vector<128x64xf32>
    %10 = tpu.matmul %8, %9, %cst_7 {dimension_numbers = #tpu.dot_dimension_numbers<[1], [0], [0], [1], [0, 0, 1, 1], [], []>} : vector<128x64xbf16>, vector<64x64xbf16>, vector<128x64xf32> -> vector<128x64xf32>
    %c0_8 = arith.constant 0 : index
    %c0_9 = arith.constant 0 : index
    %11 = vector.load %arg5[%c0_8, %c0_9] : memref<1x64xf32, #tpu.memory_space<vmem>>, vector<1x64xf32>
    %12 = vector.broadcast %11 : vector<1x64xf32> to vector<128x64xf32>
    %13 = arith.addf %10, %12 : vector<128x64xf32>
    %cst_10 = arith.constant 0.000000e+00 : f32
    %14 = vector.broadcast %cst_10 : f32 to vector<128x64xf32>
    %15 = arith.maximumf %13, %14 : vector<128x64xf32>
    %c0_11 = arith.constant 0 : index
    %c0_12 = arith.constant 0 : index
    %16 = vector.load %arg6[%c0_11, %c0_12] : memref<128x64xf32, #tpu.memory_space<vmem>>, vector<128x64xf32>
    tpu.vector_store %arg6[%c0_11, %c0_12], %15 {strides = array<i32>} : memref<128x64xf32, #tpu.memory_space<vmem>>, vector<128x64xf32>,
    return
  }
  func.func @transform_0(%arg0: i32) -> (i32, i32) {
    %c0_i32 = arith.constant 0 : i32
    %c0_i32_0 = arith.constant 0 : i32
    return %arg0, %c0_i32 : i32, i32
  }
  func.func @transform_1(%arg0: i32) -> (i32, i32) {
    %c0_i32 = arith.constant 0 : i32
    %c0_i32_0 = arith.constant 0 : i32
    %c0_i32_1 = arith.constant 0 : i32
    return %c0_i32, %c0_i32_0 : i32, i32
  }
  func.func @transform_2(%arg0: i32) -> (i32, i32) {
    %c0_i32 = arith.constant 0 : i32
    %c0_i32_0 = arith.constant 0 : i32
    %c0_i32_1 = arith.constant 0 : i32
    return %c0_i32, %c0_i32_0 : i32, i32
  }
  func.func @transform_3(%arg0: i32) -> (i32, i32) {
    %c0_i32 = arith.constant 0 : i32
    %c0_i32_0 = arith.constant 0 : i32
    %c0_i32_1 = arith.constant 0 : i32
    return %c0_i32, %c0_i32_0 : i32, i32
  }
  func.func @transform_4(%arg0: i32) -> (i32, i32) {
    %c0_i32 = arith.constant 0 : i32
    %c0_i32_0 = arith.constant 0 : i32
    %c0_i32_1 = arith.constant 0 : i32
    return %c0_i32, %c0_i32_0 : i32, i32
  }
  func.func @transform_5(%arg0: i32) -> (i32, i32) {
    %c0_i32 = arith.constant 0 : i32
    %c0_i32_0 = arith.constant 0 : i32
    return %arg0, %c0_i32 : i32, i32
  }
}

</mosaic_0001>

<llo_original>
// kernel: tpu_custom_call.1
$region0: #{tpu_custom_call.1}
  #allocation0 [shape = 'u32[]', space=smem, size = 0x4, offset = 0x4, fixed_abs, tag = 'smem constant byte address 0x4 - core index']
  #allocation1 [shape = 'u32[144,128]{1,0:T(1,128)}', space=vmem, size = 0x12000, scoped, tag = 'internal scratch']
  %s0 = inlined_call_operand.vmem [shape: f32[128,8], index: 0, kind: input, shape index: {}]
  %s1 = inlined_call_operand.vmem [shape: bf16[8,64], index: 1, kind: input, shape index: {}]
  %s2 = inlined_call_operand.vmem [shape: f32[1,64], index: 2, kind: input, shape index: {}]
  %s3 = inlined_call_operand.vmem [shape: bf16[64,64], index: 3, kind: input, shape index: {}]
  %s4 = inlined_call_operand.vmem [shape: f32[1,64], index: 4, kind: input, shape index: {}]
  %s5 = inlined_call_operand.vmem [shape: f32[128,64], index: 5, kind: output, shape index: {}]
  %s6 = sld [smem:[#allocation0]]
  $region30: #{tpu_custom_call.1} parent=0
    _
  %s8 = ssub.s32 1, %s6
  %s9 = scalar_select 0, %s8, %s6
  // Predicated region
  $region2: #{tpu_custom_call.1} parent=0 // pred_check
    _
  $region3: #{tpu_custom_call.1} parent=0 // pred_check_branch
    %11 = sbr.rel (0) target = $region5
  $region4: #{tpu_custom_call.1} parent=0 // pred_region
    _
  $region5: #{tpu_custom_call.1} parent=0 // pred_fallthru
    _
  // Predicated region
  $region6: #{tpu_custom_call.1} parent=0 // pred_check
    _
  $region7: #{tpu_custom_call.1} parent=0 // pred_check_branch
    %13 = sbr.rel (0) target = $region9
  $region8: #{tpu_custom_call.1} parent=0 // pred_region
    _
  $region9: #{tpu_custom_call.1} parent=0 // pred_fallthru
    _
  // Predicated region
  $region10: #{tpu_custom_call.1} parent=0 // pred_check
    _
  $region11: #{tpu_custom_call.1} parent=0 // pred_check_branch
    %15 = sbr.rel (0) target = $region13
  $region12: #{tpu_custom_call.1} parent=0 // pred_region
    _
  $region13: #{tpu_custom_call.1} parent=0 // pred_fallthru
    _
  // Predicated region
  $region14: #{tpu_custom_call.1} parent=0 // pred_check
    _
  $region15: #{tpu_custom_call.1} parent=0 // pred_check_branch
    %17 = sbr.rel (0) target = $region17
  $region16: #{tpu_custom_call.1} parent=0 // pred_region
    _
  $region17: #{tpu_custom_call.1} parent=0 // pred_fallthru
    _
  // Predicated region
  $region18: #{tpu_custom_call.1} parent=0 // pred_check
    _
  $region19: #{tpu_custom_call.1} parent=0 // pred_check_branch
    %19 = sbr.rel (0) target = $region21
  $region20: #{tpu_custom_call.1} parent=0 // pred_region
    _
  $region21: #{tpu_custom_call.1} parent=0 // pred_fallthru
    _
  %v21 = vld [vmem:[%s0] sm:$0xff]
  %v22 = vld [vmem:[%s0 + $0x8] sm:$0xff]
  %v23 = vld [vmem:[%s0 + $0x10] sm:$0xff]
  %v24 = vld [vmem:[%s0 + $0x18] sm:$0xff]
  %v25 = vld [vmem:[%s0 + $0x20] sm:$0xff]
  %v26 = vld [vmem:[%s0 + $0x28] sm:$0xff]
  %v27 = vld [vmem:[%s0 + $0x30] sm:$0xff]
  %v28 = vld [vmem:[%s0 + $0x38] sm:$0xff]
  %v29 = vld [vmem:[%s0 + $0x40] sm:$0xff]
  %v30 = vld [vmem:[%s0 + $0x48] sm:$0xff]
  %v31 = vld [vmem:[%s0 + $0x50] sm:$0xff]
  %v32 = vld [vmem:[%s0 + $0x58] sm:$0xff]
  %v33 = vld [vmem:[%s0 + $0x60] sm:$0xff]
  %v34 = vld [vmem:[%s0 + $0x68] sm:$0xff]
  %v35 = vld [vmem:[%s0 + $0x70] sm:$0xff]
  %v36 = vld [vmem:[%s0 + $0x78] sm:$0xff]
  %v37 = vpack.c.bf16 %v22, %v21
  %v38 = vpack.c.bf16 %v24, %v23
  %v39 = vpack.c.bf16 %v26, %v25
  %v40 = vpack.c.bf16 %v28, %v27
  %v41 = vpack.c.bf16 %v30, %v29
  %v42 = vpack.c.bf16 %v32, %v31
  %v43 = vpack.c.bf16 %v34, %v33
  %v44 = vpack.c.bf16 %v36, %v35
  %v45 = vld [vmem:[%s1] sm:$0xf]
  %v46 = vld [vmem:[%s2] sm:$0x1]
  %v48 = vlaneseq
  %v49 = vshrl.u32 %v48, 7
  %v50 = vsub.s32 0, %v49
  %v51 = vrot.slane %v46, %v50
  %vm53 = vcmask 64512
  %v55 = vsel %vm53, %v37, 0
  %v58 = vsel %vm53, %v38, 0
  %v61 = vsel %vm53, %v39, 0
  %v64 = vsel %vm53, %v40, 0
  %v67 = vsel %vm53, %v41, 0
  %v70 = vsel %vm53, %v42, 0
  %v73 = vsel %vm53, %v43, 0
  %v76 = vsel %vm53, %v44, 0
  %vm78 = vcmask 1043456
  %v80 = vsel %vm78, %v45, 0
  %82 = vmatprep.subr.bf16.mxu0 0
  %83 = vmatpush1.bf16.msra.mxu0 %v80
  %84 = vmatprep.subr.bf16.mxu0 0
  %85 = vmatpush1.bf16.msra.mxu0 0
  %86 = vmatprep.subr.bf16.mxu0 0
  %87 = vmatpush1.bf16.msra.mxu0 0
  %88 = vmatprep.subr.bf16.mxu0 0
  %89 = vmatpush1.bf16.msra.mxu0 0
  %90 = vmatprep.subr.bf16.mxu0 0
  %91 = vmatpush1.bf16.msra.mxu0 0
  %92 = vmatprep.subr.bf16.mxu0 0
  %93 = vmatpush1.bf16.msra.mxu0 0
  %94 = vmatprep.subr.bf16.mxu0 0
  %95 = vmatpush1.bf16.msra.mxu0 0
  %96 = vmatprep.subr.bf16.mxu0 0
  %97 = vmatpush1.bf16.msra.mxu0 0
  %98 = vmatprep.subr.bf16.mxu0 0
  %99 = vmatpush1.bf16.msra.mxu0 0
  %100 = vmatprep.subr.bf16.mxu0 0
  %101 = vmatpush1.bf16.msra.mxu0 0
  %102 = vmatprep.subr.bf16.mxu0 0
  %103 = vmatpush1.bf16.msra.mxu0 0
  %104 = vmatprep.subr.bf16.mxu0 0
  %105 = vmatpush1.bf16.msra.mxu0 0
  %106 = vmatprep.subr.bf16.mxu0 0
  %107 = vmatpush1.bf16.msra.mxu0 0
  %108 = vmatprep.subr.bf16.mxu0 0
  %109 = vmatpush1.bf16.msra.mxu0 0
  %110 = vmatprep.subr.bf16.mxu0 0
  %111 = vmatpush1.bf16.msra.mxu0 0
  %112 = vmatprep.subr.bf16.mxu0 0
  %113 = vmatpush1.bf16.msra.mxu0 0
  %114 = vmatprep.mubr.bf16.mxu0 0
  %115 = vmatmul.mubr.bf16.gmra.mrb[0].mxu0 %v55
  %v116 = vpop.f32.mrb[0].mxu0
  %v117 = vadd.f32 %v51, %v116
  %v118 = vpop.f32.mrb[0].mxu0
  %v119 = vpop.f32.mrb[0].mxu0
  %v120 = vadd.f32 %v51, %v119
  %v121 = vpop.f32.mrb[0].mxu0
  %122 = vmatprep.mubr.bf16.mxu0 0
  %123 = vmatmul.mubr.bf16.gmra.mrb[0].mxu0 %v58
  %v124 = vpop.f32.mrb[0].mxu0
  %v125 = vadd.f32 %v51, %v124
  %v126 = vpop.f32.mrb[0].mxu0
  %v127 = vpop.f32.mrb[0].mxu0
  %v128 = vadd.f32 %v51, %v127
  %v129 = vpop.f32.mrb[0].mxu0
  %130 = vmatprep.mubr.bf16.mxu0 0
  %131 = vmatmul.mubr.bf16.gmra.mrb[0].mxu0 %v61
  %v132 = vpop.f32.mrb[0].mxu0
  %v133 = vadd.f32 %v51, %v132
  %v134 = vpop.f32.mrb[0].mxu0
  %v135 = vpop.f32.mrb[0].mxu0
  %v136 = vadd.f32 %v51, %v135
  %v137 = vpop.f32.mrb[0].mxu0
  %138 = vmatprep.mubr.bf16.mxu0 0
  %139 = vmatmul.mubr.bf16.gmra.mrb[0].mxu0 %v64
  %v140 = vpop.f32.mrb[0].mxu0
  %v141 = vadd.f32 %v51, %v140
  %v142 = vpop.f32.mrb[0].mxu0
  %v143 = vpop.f32.mrb[0].mxu0
  %v144 = vadd.f32 %v51, %v143
  %v145 = vpop.f32.mrb[0].mxu0
  %146 = vmatprep.mubr.bf16.mxu0 0
  %147 = vmatmul.mubr.bf16.gmra.mrb[0].mxu0 %v67
  %v148 = vpop.f32.mrb[0].mxu0
  %v149 = vadd.f32 %v51, %v148
  %v150 = vpop.f32.mrb[0].mxu0
  %v151 = vpop.f32.mrb[0].mxu0
  %v152 = vadd.f32 %v51, %v151
  %v153 = vpop.f32.mrb[0].mxu0
  %154 = vmatprep.mubr.bf16.mxu0 0
  %155 = vmatmul.mubr.bf16.gmra.mrb[0].mxu0 %v70
  %v156 = vpop.f32.mrb[0].mxu0
  %v157 = vadd.f32 %v51, %v156
  %v158 = vpop.f32.mrb[0].mxu0
  %v159 = vpop.f32.mrb[0].mxu0
  %v160 = vadd.f32 %v51, %v159
  %v161 = vpop.f32.mrb[0].mxu0
  %162 = vmatprep.mubr.bf16.mxu0 0
  %163 = vmatmul.mubr.bf16.gmra.mrb[0].mxu0 %v73
  %v164 = vpop.f32.mrb[0].mxu0
  %v165 = vadd.f32 %v51, %v164
  %v166 = vpop.f32.mrb[0].mxu0
  %v167 = vpop.f32.mrb[0].mxu0
  %v168 = vadd.f32 %v51, %v167
  %v169 = vpop.f32.mrb[0].mxu0
  %170 = vmatprep.mubr.bf16.mxu0 0
  %171 = vmatmul.mubr.bf16.gmra.mrb[0].mxu0 %v76
  %v172 = vpop.f32.mrb[0].mxu0
  %v173 = vadd.f32 %v51, %v172
  %v174 = vpop.f32.mrb[0].mxu0
  %v175 = vpop.f32.mrb[0].mxu0
  %v176 = vadd.f32 %v51, %v175
  %v177 = vpop.f32.mrb[0].mxu0
  %178 = vdwg.mxu0
  %v179 = vtanh.pop %v117
  %v180 = vtanh.pop %v120
  %v181 = vtanh.pop %v125
  %v182 = vtanh.pop %v128
  %v183 = vtanh.pop %v133
  %v184 = vtanh.pop %v136
  %v185 = vtanh.pop %v141
  %v186 = vtanh.pop %v144
  %v187 = vtanh.pop %v149
  %v188 = vtanh.pop %v152
  %v189 = vtanh.pop %v157
  %v190 = vtanh.pop %v160
  %v191 = vtanh.pop %v165
  %v192 = vtanh.pop %v168
  %v193 = vtanh.pop %v173
  %v194 = vtanh.pop %v176
  %v195 = vpack.c.bf16 %v180, %v179
  %v196 = vpack.c.bf16 %v182, %v181
  %v197 = vpack.c.bf16 %v184, %v183
  %v198 = vpack.c.bf16 %v186, %v185
  %v199 = vpack.c.bf16 %v188, %v187
  %v200 = vpack.c.bf16 %v190, %v189
  %v201 = vpack.c.bf16 %v192, %v191
  %v202 = vpack.c.bf16 %v194, %v193
  %v203 = vld [vmem:[%s3] sm:$0xf]
  %v204 = vld [vmem:[%s3 + $0x4] sm:$0xf]
  %v205 = vld [vmem:[%s3 + $0x8] sm:$0xf]
  %v206 = vld [vmem:[%s3 + $0xc] sm:$0xf]
  %v207 = vld [vmem:[%s3 + $0x10] sm:$0xf]
  %v208 = vld [vmem:[%s3 + $0x14] sm:$0xf]
  %v209 = vld [vmem:[%s3 + $0x18] sm:$0xf]
  %v210 = vld [vmem:[%s3 + $0x1c] sm:$0xf]
  %v211 = vld [vmem:[%s4] sm:$0x1]
  %v213 = vlaneseq
  %v214 = vshrl.u32 %v213, 7
  %v215 = vsub.s32 0, %v214
  %v216 = vrot.slane %v211, %v215
  %v226 = vunpack.c.l.b16 %v203
  %v227 = vunpack.c.l.b16 %v204
  %v228 = vunpack.c.l.b16 %v205
  %v229 = vunpack.c.l.b16 %v206
  %v230 = vunpack.c.l.b16 %v207
  %v231 = vunpack.c.l.b16 %v208
  %v232 = vunpack.c.l.b16 %v209
  %v233 = vunpack.c.l.b16 %v210
  %v234 = vpack.c.b16 %v227, %v226
  %v235 = vpack.c.b16 %v229, %v228
  %v236 = vpack.c.b16 %v231, %v230
  %v237 = vpack.c.b16 %v233, %v232
  %vm242 = vcmask 523264
  %v244 = vsel %vm242, %v195, 0
  %v247 = vsel %vm242, %v196, 0
  %v250 = vsel %vm242, %v197, 0
  %v253 = vsel %vm242, %v198, 0
  %v256 = vsel %vm242, %v199, 0
  %v259 = vsel %vm242, %v200, 0
  %v262 = vsel %vm242, %v201, 0
  %v265 = vsel %vm242, %v202, 0
  %267 = vmatprep.subr.bf16.mxu0 0
  %268 = vmatpush1.bf16.msra.mxu0 %v234
  %269 = vmatprep.subr.bf16.mxu0 0
  %270 = vmatpush1.bf16.msra.mxu0 %v235
  %271 = vmatprep.subr.bf16.mxu0 0
  %272 = vmatpush1.bf16.msra.mxu0 %v236
  %273 = vmatprep.subr.bf16.mxu0 0
  %274 = vmatpush1.bf16.msra.mxu0 %v237
  %275 = vmatprep.subr.bf16.mxu0 0
  %276 = vmatpush1.bf16.msra.mxu0 0
  %277 = vmatprep.subr.bf16.mxu0 0
  %278 = vmatpush1.bf16.msra.mxu0 0
  %279 = vmatprep.subr.bf16.mxu0 0
  %280 = vmatpush1.bf16.msra.mxu0 0
  %281 = vmatprep.subr.bf16.mxu0 0
  %282 = vmatpush1.bf16.msra.mxu0 0
  %283 = vmatprep.subr.bf16.mxu0 0
  %284 = vmatpush1.bf16.msra.mxu0 0
  %285 = vmatprep.subr.bf16.mxu0 0
  %286 = vmatpush1.bf16.msra.mxu0 0
  %287 = vmatprep.subr.bf16.mxu0 0
  %288 = vmatpush1.bf16.msra.mxu0 0
  %289 = vmatprep.subr.bf16.mxu0 0
  %290 = vmatpush1.bf16.msra.mxu0 0
  %291 = vmatprep.subr.bf16.mxu0 0
  %292 = vmatpush1.bf16.msra.mxu0 0
  %293 = vmatprep.subr.bf16.mxu0 0
  %294 = vmatpush1.bf16.msra.mxu0 0
  %295 = vmatprep.subr.bf16.mxu0 0
  %296 = vmatpush1.bf16.msra.mxu0 0
  %297 = vmatprep.subr.bf16.mxu0 0
  %298 = vmatpush1.bf16.msra.mxu0 0
  %299 = vmatprep.mubr.bf16.mxu0 0
  %300 = vmatmul.mubr.bf16.gmra.mrb[0].mxu0 %v244
  %v301 = vpop.f32.mrb[0].mxu0
  %v302 = vadd.f32 %v216, %v301
  %v303 = vpop.f32.mrb[0].mxu0
  %v304 = vpop.f32.mrb[0].mxu0
  %v305 = vadd.f32 %v216, %v304
  %v306 = vpop.f32.mrb[0].mxu0
  %307 = vmatprep.mubr.bf16.mxu0 0
  %308 = vmatmul.mubr.bf16.gmra.mrb[0].mxu0 %v247
  %v309 = vpop.f32.mrb[0].mxu0
  %v310 = vadd.f32 %v216, %v309
  %v311 = vpop.f32.mrb[0].mxu0
  %v312 = vpop.f32.mrb[0].mxu0
  %v313 = vadd.f32 %v216, %v312
  %v314 = vpop.f32.mrb[0].mxu0
  %315 = vmatprep.mubr.bf16.mxu0 0
  %316 = vmatmul.mubr.bf16.gmra.mrb[0].mxu0 %v250
  %v317 = vpop.f32.mrb[0].mxu0
  %v318 = vadd.f32 %v216, %v317
  %v319 = vpop.f32.mrb[0].mxu0
  %v320 = vpop.f32.mrb[0].mxu0
  %v321 = vadd.f32 %v216, %v320
  %v322 = vpop.f32.mrb[0].mxu0
  %323 = vmatprep.mubr.bf16.mxu0 0
  %324 = vmatmul.mubr.bf16.gmra.mrb[0].mxu0 %v253
  %v325 = vpop.f32.mrb[0].mxu0
  %v326 = vadd.f32 %v216, %v325
  %v327 = vpop.f32.mrb[0].mxu0
  %v328 = vpop.f32.mrb[0].mxu0
  %v329 = vadd.f32 %v216, %v328
  %v330 = vpop.f32.mrb[0].mxu0
  %331 = vmatprep.mubr.bf16.mxu0 0
  %332 = vmatmul.mubr.bf16.gmra.mrb[0].mxu0 %v256
  %v333 = vpop.f32.mrb[0].mxu0
  %v334 = vadd.f32 %v216, %v333
  %v335 = vpop.f32.mrb[0].mxu0
  %v336 = vpop.f32.mrb[0].mxu0
  %v337 = vadd.f32 %v216, %v336
  %v338 = vpop.f32.mrb[0].mxu0
  %339 = vmatprep.mubr.bf16.mxu0 0
  %340 = vmatmul.mubr.bf16.gmra.mrb[0].mxu0 %v259
  %v341 = vpop.f32.mrb[0].mxu0
  %v342 = vadd.f32 %v216, %v341
  %v343 = vpop.f32.mrb[0].mxu0
  %v344 = vpop.f32.mrb[0].mxu0
  %v345 = vadd.f32 %v216, %v344
  %v346 = vpop.f32.mrb[0].mxu0
  %347 = vmatprep.mubr.bf16.mxu0 0
  %348 = vmatmul.mubr.bf16.gmra.mrb[0].mxu0 %v262
  %v349 = vpop.f32.mrb[0].mxu0
  %v350 = vadd.f32 %v216, %v349
  %v351 = vpop.f32.mrb[0].mxu0
  %v352 = vpop.f32.mrb[0].mxu0
  %v353 = vadd.f32 %v216, %v352
  %v354 = vpop.f32.mrb[0].mxu0
  %355 = vmatprep.mubr.bf16.mxu0 0
  %356 = vmatmul.mubr.bf16.gmra.mrb[0].mxu0 %v265
  %v357 = vpop.f32.mrb[0].mxu0
  %v358 = vadd.f32 %v216, %v357
  %v359 = vpop.f32.mrb[0].mxu0
  %v360 = vpop.f32.mrb[0].mxu0
  %v361 = vadd.f32 %v216, %v360
  %v362 = vpop.f32.mrb[0].mxu0
  %363 = vdwg.mxu0
  %v364 = vmax.f32 %v302, 0.0
  %v365 = vmax.f32 %v305, 0.0
  %v366 = vmax.f32 %v310, 0.0
  %v367 = vmax.f32 %v313, 0.0
  %v368 = vmax.f32 %v318, 0.0
  %v369 = vmax.f32 %v321, 0.0
  %v370 = vmax.f32 %v326, 0.0
  %v371 = vmax.f32 %v329, 0.0
  %v372 = vmax.f32 %v334, 0.0
  %v373 = vmax.f32 %v337, 0.0
  %v374 = vmax.f32 %v342, 0.0
  %v375 = vmax.f32 %v345, 0.0
  %v376 = vmax.f32 %v350, 0.0
  %v377 = vmax.f32 %v353, 0.0
  %v378 = vmax.f32 %v358, 0.0
  %v379 = vmax.f32 %v361, 0.0
  %380 = vst.msk [vmem:[%s5] sm:$0xff] %vm242, %v364
  %381 = vst.msk [vmem:[%s5 + $0x8] sm:$0xff] %vm242, %v365
  %382 = vst.msk [vmem:[%s5 + $0x10] sm:$0xff] %vm242, %v366
  %383 = vst.msk [vmem:[%s5 + $0x18] sm:$0xff] %vm242, %v367
  %384 = vst.msk [vmem:[%s5 + $0x20] sm:$0xff] %vm242, %v368
  %385 = vst.msk [vmem:[%s5 + $0x28] sm:$0xff] %vm242, %v369
  %386 = vst.msk [vmem:[%s5 + $0x30] sm:$0xff] %vm242, %v370
  %387 = vst.msk [vmem:[%s5 + $0x38] sm:$0xff] %vm242, %v371
  %388 = vst.msk [vmem:[%s5 + $0x40] sm:$0xff] %vm242, %v372
  %389 = vst.msk [vmem:[%s5 + $0x48] sm:$0xff] %vm242, %v373
  %390 = vst.msk [vmem:[%s5 + $0x50] sm:$0xff] %vm242, %v374
  %391 = vst.msk [vmem:[%s5 + $0x58] sm:$0xff] %vm242, %v375
  %392 = vst.msk [vmem:[%s5 + $0x60] sm:$0xff] %vm242, %v376
  %393 = vst.msk [vmem:[%s5 + $0x68] sm:$0xff] %vm242, %v377
  %394 = vst.msk [vmem:[%s5 + $0x70] sm:$0xff] %vm242, %v378
  %395 = vst.msk [vmem:[%s5 + $0x78] sm:$0xff] %vm242, %v379
  // Predicated region
  $region22: #{tpu_custom_call.1} parent=0 // pred_check
    _
  $region23: #{tpu_custom_call.1} parent=0 // pred_check_branch
    %397 = sbr.rel (0) target = $region25
  $region24: #{tpu_custom_call.1} parent=0 // pred_region
    _
  $region25: #{tpu_custom_call.1} parent=0 // pred_fallthru
    _
  // Predicated region
  $region26: #{tpu_custom_call.1} parent=0 // pred_check
    _
  $region27: #{tpu_custom_call.1} parent=0 // pred_check_branch
    %399 = sbr.rel (0) target = $region29
  $region28: #{tpu_custom_call.1} parent=0 // pred_region
    _
  $region29: #{tpu_custom_call.1} parent=0 // pred_fallthru
    _

</llo_original>
